<compile_context>
chip_gen: v7x
topology: tpu7x:2x2x1
jax: 0.10.0
libtpu: 0.0.40
codegen_flags: <defaults>
</compile_context>

<pallas_src>
import jax
import jax.numpy as jnp
from jax.experimental import pallas as pl
from jax.experimental.pallas import tpu as pltpu


def _round_up(x: int, m: int) -> int:
    return ((x + m - 1) // m) * m


def _make_partial_nll_kernel(n_valid: int, tile_n: int, c: int, tiles_per_split: int):
    """Kernel computing, per split, sum over its rows of the per-sample NLL."""

    def kernel(logits_ref, target_ref, out_ref):
        p_id = pl.program_id(0)   # split index (megacore-parallel on v7x)
        i_id = pl.program_id(1)   # tile index within the split (reduction axis)

        @pl.when(i_id == 0)
        def _():
            out_ref[...] = jnp.zeros_like(out_ref)

        x = logits_ref[...].astype(jnp.float32)      # (tile_n, c) upcast in-register
        t = target_ref[...]                          # (tile_n, 1) int32

        # numerically-stable row-wise logsumexp
        row_max = jnp.max(x, axis=-1, keepdims=True)                           # (tile_n, 1)
        lse = jnp.log(jnp.sum(jnp.exp(x - row_max), axis=-1, keepdims=True))   # (tile_n, 1)
        lse = lse + row_max

        # gather the target-class logit via compare+select (VPU filler under the DMA)
        col = jax.lax.broadcasted_iota(jnp.int32, (tile_n, c), 1)
        tgt_logit = jnp.sum(jnp.where(col == t, x, 0.0), axis=-1, keepdims=True)

        nll = lse - tgt_logit                                                   # (tile_n, 1)

        # mask padded rows (rows >= true batch size) out of the reduction
        row0 = (p_id * tiles_per_split + i_id) * tile_n
        rows = jax.lax.broadcasted_iota(jnp.int32, (tile_n, 1), 0) + row0
        nll = jnp.where(rows < n_valid, nll, 0.0)

        # accumulate into this split's resident output block
        out_ref[...] += jnp.sum(nll, axis=0, keepdims=True)[None]               # (1,1,1)

    return kernel


def focal_loss(logits, target, gamma: float = 0.0, alpha: float = 1.0,
               *, num_splits: int = 2, max_tile_n: int = 512):
    """logits: (N, C) float (f32 or bf16), target: (N,) int. Returns scalar f32 loss."""
    n, c = logits.shape
    itemsize = jnp.dtype(logits.dtype).itemsize

    # ---- tile sizing: big enough to amortize per-step overhead (~0.35 us), small enough
    #      that a double-buffered logits tile fits comfortably in v7x's 64 MiB VMEM.
    per_buffer_budget = 12 << 20                                   # ~12 MiB per buffer
    cap = max(8, (per_buffer_budget // max(c * itemsize, 1)) // 8 * 8)
    rows_per_split = _round_up(-(-n // num_splits), 8)
    tile_n = max(8, (min(max_tile_n, cap, rows_per_split) // 8) * 8)

    n_pad = _round_up(n, tile_n * num_splits)
    tiles_per_split = n_pad // (tile_n * num_splits)

    target2d = target.astype(jnp.int32).reshape(n, 1)
    if n_pad != n:
        logits = jnp.pad(logits, ((0, n_pad - n), (0, 0)))
        target2d = jnp.pad(target2d, ((0, n_pad - n), (0, 0)))

    kernel = _make_partial_nll_kernel(n, tile_n, c, tiles_per_split)

    # explicit scoped-VMEM budget (default would silently cap large tiles)
    vmem_need = 2 * tile_n * c * itemsize + 2 * tile_n * 4 + (1 << 20)
    vmem_limit = int(min(max(vmem_need, 16 << 20), 48 << 20))

    partials = pl.pallas_call(
        kernel,
        out_shape=jax.ShapeDtypeStruct((num_splits, 1, 1), jnp.float32),
        grid_spec=pltpu.PrefetchScalarGridSpec(
            num_scalar_prefetch=0,
            grid=(num_splits, tiles_per_split),
            in_specs=[
                pl.BlockSpec((tile_n, c), lambda p, i: (p * tiles_per_split + i, 0)),
                pl.BlockSpec((tile_n, 1), lambda p, i: (p * tiles_per_split + i, 0)),
            ],
            out_specs=pl.BlockSpec((1, 1, 1), lambda p, i: (p, 0, 0)),
        ),
        compiler_params=pltpu.CompilerParams(
            dimension_semantics=("parallel", "arbitrary"),
            vmem_limit_bytes=vmem_limit,
        ),
    )(logits, target2d)

    # tiny scalar epilogue: batch-mean NLL + focal transform, executed exactly once
    logp = jnp.sum(partials) / jnp.float32(n)
    p = jnp.exp(-logp)
    one_minus_p = jnp.maximum(1.0 - p, 0.0)   # guard pow against a marginally negative base
    return jnp.float32(alpha) * (one_minus_p ** jnp.float32(gamma)) * logp


def _reference_focal_loss(logits, target, gamma=0.0, alpha=1.0):
    # plain-JAX reference for sanity checking
    logits = logits.astype(jnp.float32)
    lse = jax.nn.logsumexp(logits, axis=-1)
    tgt = jnp.take_along_axis(logits, target[:, None].astype(jnp.int32), axis=-1)[:, 0]
    logp = jnp.mean(lse - tgt)
    p = jnp.exp(-logp)
    return alpha * (1.0 - p) ** gamma * logp


if __name__ == "__main__":
    # Small synthetic shapes: batch N=8, classes C=32
    key = jax.random.PRNGKey(0)
    k1, k2 = jax.random.split(key)
    N, C = 8, 32
    logits = jax.random.normal(k1, (N, C), dtype=jnp.float32)
    target = jax.random.randint(k2, (N,), 0, C, dtype=jnp.int32)

    gamma, alpha = 2.0, 0.25  # exercise the general focal path (defaults 0, 1 also work)

    out = focal_loss(logits, target, gamma=gamma, alpha=alpha)
    out = jax.block_until_ready(out)

    ref = _reference_focal_loss(logits, target, gamma=gamma, alpha=alpha)
    assert jnp.allclose(out, ref, atol=1e-5, rtol=1e-5), (out, ref)

    print("KERNEL_OK")
</pallas_src>

<mosaic_0001>
module attributes {stable_mosaic.version = 11 : i64} {
  func.func @kernel(%arg0: i32, %arg1: i32, %arg2: memref<8x32xf32, #tpu.memory_space<vmem>>, %arg3: memref<8x1xi32, #tpu.memory_space<vmem>>, %arg4: memref<1x1x1xf32, #tpu.memory_space<vmem>>) attributes {dimension_semantics = [#tpu.dimension_semantics<parallel>, #tpu.dimension_semantics<arbitrary>], iteration_bounds = array<i64: 2, 1>, scalar_prefetch = 0 : i64, scratch_operands = 0 : i64, tpu.core_type = #tpu.core_type<tc>, window_params = [{transform_indices = @transform_0, window_bounds = array<i64: 8, 32>}, {transform_indices = @transform_1, window_bounds = array<i64: 8, 1>}, {transform_indices = @transform_2, window_bounds = array<i64: 1, 1, 1>}]} {
    %c0_i32 = arith.constant 0 : i32
    %0 = arith.cmpi eq, %arg1, %c0_i32 : i32
    %1 = arith.extui %0 : i1 to i32
    %c0_i32_0 = arith.constant 0 : i32
    %2 = arith.cmpi ne, %1, %c0_i32_0 : i32
    scf.if %2 {
      %cst_16 = arith.constant 0.000000e+00 : f32
      %38 = vector.broadcast %cst_16 : f32 to vector<1x1x1xf32>
      %c0_17 = arith.constant 0 : index
      %c0_18 = arith.constant 0 : index
      %c0_19 = arith.constant 0 : index
      %39 = vector.load %arg4[%c0_17, %c0_18, %c0_19] : memref<1x1x1xf32, #tpu.memory_space<vmem>>, vector<1x1x1xf32>
      tpu.vector_store %arg4[%c0_17, %c0_18, %c0_19], %38 {strides = array<i32>} : memref<1x1x1xf32, #tpu.memory_space<vmem>>, vector<1x1x1xf32>,
    } else {
    }
    %c0 = arith.constant 0 : index
    %c0_1 = arith.constant 0 : index
    %3 = vector.load %arg2[%c0, %c0_1] : memref<8x32xf32, #tpu.memory_space<vmem>>, vector<8x32xf32>
    %c0_2 = arith.constant 0 : index
    %c0_3 = arith.constant 0 : index
    %4 = vector.load %arg3[%c0_2, %c0_3] : memref<8x1xi32, #tpu.memory_space<vmem>>, vector<8x1xi32>
    %cst = arith.constant dense<0xFF800000> : vector<8xf32>
    %5 = vector.multi_reduction <maximumf>, %3, %cst [1] : vector<8x32xf32> to vector<8xf32>
    %6 = vector.shape_cast %5 : vector<8xf32> to vector<8x1xf32>
    %7 = vector.broadcast %6 : vector<8x1xf32> to vector<8x32xf32>
    %8 = arith.subf %3, %7 : vector<8x32xf32>
    %9 = math.exp %8 : vector<8x32xf32>
    %cst_4 = arith.constant dense<0.000000e+00> : vector<8xf32>
    %10 = vector.multi_reduction <add>, %9, %cst_4 [1] : vector<8x32xf32> to vector<8xf32>
    %11 = vector.shape_cast %10 : vector<8xf32> to vector<8x1xf32>
    %12 = math.log %11 : vector<8x1xf32>
    %13 = arith.addf %12, %6 : vector<8x1xf32>
    %14 = tpu.iota {dimensions = array<i32: 1>} : vector<8x32xi32>
    %15 = vector.broadcast %4 : vector<8x1xi32> to vector<8x32xi32>
    %16 = arith.cmpi eq, %14, %15 : vector<8x32xi32>
    %cst_5 = arith.constant 0.000000e+00 : f32
    %17 = vector.broadcast %cst_5 : f32 to vector<8x32xf32>
    %18 = arith.select %16, %3, %17 : vector<8x32xi1>, vector<8x32xf32>
    %cst_6 = arith.constant dense<0.000000e+00> : vector<8xf32>
    %19 = vector.multi_reduction <add>, %18, %cst_6 [1] : vector<8x32xf32> to vector<8xf32>
    %20 = vector.shape_cast %19 : vector<8xf32> to vector<8x1xf32>
    %21 = arith.subf %13, %20 : vector<8x1xf32>
    %c1_i32 = arith.constant 1 : i32
    %22 = arith.muli %arg0, %c1_i32 : i32
    %23 = arith.addi %22, %arg1 : i32
    %c8_i32 = arith.constant 8 : i32
    %24 = arith.muli %23, %c8_i32 : i32
    %25 = tpu.iota {dimensions = array<i32: 0>} : vector<8x1xi32>
    %26 = vector.broadcast %24 : i32 to vector<8x1xi32>
    %27 = arith.addi %25, %26 : vector<8x1xi32>
    %c8_i32_7 = arith.constant 8 : i32
    %28 = vector.broadcast %c8_i32_7 : i32 to vector<8x1xi32>
    %29 = arith.cmpi slt, %27, %28 : vector<8x1xi32>
    %cst_8 = arith.constant 0.000000e+00 : f32
    %30 = vector.broadcast %cst_8 : f32 to vector<8x1xf32>
    %31 = arith.select %29, %21, %30 : vector<8x1xi1>, vector<8x1xf32>
    %c0_9 = arith.constant 0 : index
    %c0_10 = arith.constant 0 : index
    %c0_11 = arith.constant 0 : index
    %32 = vector.load %arg4[%c0_9, %c0_10, %c0_11] : memref<1x1x1xf32, #tpu.memory_space<vmem>>, vector<1x1x1xf32>
    %cst_12 = arith.constant dense<0.000000e+00> : vector<1xf32>
    %33 = vector.multi_reduction <add>, %31, %cst_12 [0] : vector<8x1xf32> to vector<1xf32>
    %34 = vector.shape_cast %33 : vector<1xf32> to vector<1x1xf32>
    %35 = vector.shape_cast %34 : vector<1x1xf32> to vector<1x1x1xf32>
    %36 = arith.addf %32, %35 : vector<1x1x1xf32>
    %c0_13 = arith.constant 0 : index
    %c0_14 = arith.constant 0 : index
    %c0_15 = arith.constant 0 : index
    %37 = vector.load %arg4[%c0_13, %c0_14, %c0_15] : memref<1x1x1xf32, #tpu.memory_space<vmem>>, vector<1x1x1xf32>
    tpu.vector_store %arg4[%c0_13, %c0_14, %c0_15], %36 {strides = array<i32>} : memref<1x1x1xf32, #tpu.memory_space<vmem>>, vector<1x1x1xf32>,
    return
  }
  func.func @transform_0(%arg0: i32, %arg1: i32) -> (i32, i32) {
    %c1_i32 = arith.constant 1 : i32
    %0 = arith.muli %arg0, %c1_i32 : i32
    %1 = arith.addi %0, %arg1 : i32
    %c0_i32 = arith.constant 0 : i32
    %c0_i32_0 = arith.constant 0 : i32
    return %1, %c0_i32 : i32, i32
  }
  func.func @transform_1(%arg0: i32, %arg1: i32) -> (i32, i32) {
    %c1_i32 = arith.constant 1 : i32
    %0 = arith.muli %arg0, %c1_i32 : i32
    %1 = arith.addi %0, %arg1 : i32
    %c0_i32 = arith.constant 0 : i32
    %c0_i32_0 = arith.constant 0 : i32
    return %1, %c0_i32 : i32, i32
  }
  func.func @transform_2(%arg0: i32, %arg1: i32) -> (i32, i32, i32) {
    %c0_i32 = arith.constant 0 : i32
    %c0_i32_0 = arith.constant 0 : i32
    %c0_i32_1 = arith.constant 0 : i32
    return %arg0, %c0_i32, %c0_i32_0 : i32, i32, i32
  }
}

</mosaic_0001>

<llo_original>
// kernel: tpu_custom_call.1
$region0: #{tpu_custom_call.1}
  #allocation0 [shape = 'u32[]', space=smem, size = 0x4, offset = 0x4, fixed_abs, tag = 'smem constant byte address 0x4 - core index']
  #allocation1 [shape = 'u32[144,128]{1,0:T(1,128)}', space=vmem, size = 0x12000, scoped, tag = 'internal scratch']
  %s0 = inlined_call_operand.vmem [shape: f32[16,32], index: 0, kind: input, shape index: {}]
  %s1 = inlined_call_operand.vmem [shape: s32[16,1], index: 1, kind: input, shape index: {}]
  %s2 = inlined_call_operand.vmem [shape: f32[2,1,1], index: 2, kind: output, shape index: {}]
  %s3 = sld [smem:[#allocation0]]
  $region45: #{tpu_custom_call.1} parent=0
    _
  %s5 = ssub.s32 1, %s3
  %s6 = scalar_select 0, %s5, %s3
  loop: start=0, step=1, limit=4
  $region2: #{tpu_custom_call.1} parent=0 // loop_pre_header
    _
  $region3: #{tpu_custom_call.1} parent=0 // loop_header
    %s8 = sphi 0, %s12
    %p9 = scmp.ge.s32.totalorder %s8, 4
    %s15 = sphi 0, %s27
    %s16 = sphi 0, %s23
    %s17 = sphi 0, %s15
    %s18 = sphi 0, %s16
    %s19 = sphi 0, %s17
    %s20 = sphi 0, %s18
    %s32 = sphi 0, %s34
    %s35 = sphi 0, %s32
    %s36 = sphi 0, %s35
    %s52 = sphi 0, %s36
    %s60 = sphi 0, %s62
    %s63 = sphi 0, %s60
    %s64 = sphi 0, %s63
    %s80 = sphi 0, %s64
    %s86 = sphi 0, %s88
    %s89 = sphi 0, %s86
    %s90 = sphi 0, %s89
    %s106 = sphi 0, %s90
  $region4: #{tpu_custom_call.1} parent=0 // loop_header_branch
    %11 = sbr.rel (%p9) target = $region8
  $region5: #{tpu_custom_call.1} parent=0 // loop_body
    %s13 = ssub.s32 %s8, 1
    %s14 = ssub.s32 %s8, 2
    %s21 = sadd.s32 1, %s16
    %p22 = scmp.ge.s32.totalorder %s21, 1
    %s23 = scalar_select %p22, 0, %s21
    %s24 = sadd.s32 1, %s15
    %s25 = scalar_select %p22, %s24, %s15
    %p26 = scmp.ge.s32.totalorder %s25, 2
    %s27 = scalar_select %p26, 0, %s25
    %s28 = sadd.s32 %s15, %s16
    %s29 = sadd.s32 %s27, %s23
    %s30 = ssub.s32 %s28, %s29
    %p31 = scmp.eq.s32.totalorder %s30, 0
    %s33 = sadd.s32 %s32, 1
    %s34 = scalar_select %p31, %s32, %s33
    %p37 = pneg %p31
    %p38 = scmp.eq.s32.totalorder %s8, 1
    %p39 = por %p37, %p38
    %p40 = scmp.ne.s32.totalorder %s32, %s35
    %p41 = scmp.eq.s32.totalorder %s8, 0
    %p42 = por %p40, %p41
    %p43 = scmp.ne.s32.totalorder %s32, %s35
    %p44 = scmp.eq.s32.totalorder %s13, 1
    %p45 = por %p43, %p44
    %p46 = scmp.ne.s32.totalorder %s35, %s36
    %p47 = scmp.eq.s32.totalorder %s13, 0
    %p48 = por %p46, %p47
    %p49 = scmp.ne.s32.totalorder %s35, %s36
    %p50 = scmp.eq.s32.totalorder %s14, 1
    %p51 = por %p49, %p50
    %p53 = scmp.ne.s32.totalorder %s36, %s52
    %p54 = scmp.eq.s32.totalorder %s14, 0
    %p55 = por %p53, %p54
    %s56 = sadd.s32 %s15, %s16
    %s57 = sadd.s32 %s27, %s23
    %s58 = ssub.s32 %s56, %s57
    %p59 = scmp.eq.s32.totalorder %s58, 0
    %s61 = sadd.s32 %s60, 1
    %s62 = scalar_select %p59, %s60, %s61
    %p65 = pneg %p59
    %p66 = scmp.eq.s32.totalorder %s8, 1
    %p67 = por %p65, %p66
    %p68 = scmp.ne.s32.totalorder %s60, %s63
    %p69 = scmp.eq.s32.totalorder %s8, 0
    %p70 = por %p68, %p69
    %p71 = scmp.ne.s32.totalorder %s60, %s63
    %p72 = scmp.eq.s32.totalorder %s13, 1
    %p73 = por %p71, %p72
    %p74 = scmp.ne.s32.totalorder %s63, %s64
    %p75 = scmp.eq.s32.totalorder %s13, 0
    %p76 = por %p74, %p75
    %p77 = scmp.ne.s32.totalorder %s63, %s64
    %p78 = scmp.eq.s32.totalorder %s14, 1
    %p79 = por %p77, %p78
    %p81 = scmp.ne.s32.totalorder %s64, %s80
    %p82 = scmp.eq.s32.totalorder %s14, 0
    %p83 = por %p81, %p82
    %s84 = ssub.s32 %s15, %s27
    %p85 = scmp.eq.s32.totalorder %s84, 0
    %s87 = sadd.s32 %s86, 1
    %s88 = scalar_select %p85, %s86, %s87
    %p91 = pneg %p85
    %p92 = scmp.eq.s32.totalorder %s8, 1
    %p93 = por %p91, %p92
    %p94 = scmp.ne.s32.totalorder %s86, %s89
    %p95 = scmp.eq.s32.totalorder %s8, 0
    %p96 = por %p94, %p95
    %p97 = scmp.ne.s32.totalorder %s86, %s89
    %p98 = scmp.eq.s32.totalorder %s13, 1
    %p99 = por %p97, %p98
    %p100 = scmp.ne.s32.totalorder %s89, %s90
    %p101 = scmp.eq.s32.totalorder %s13, 0
    %p102 = por %p100, %p101
    %p103 = scmp.ne.s32.totalorder %s89, %s90
    %p104 = scmp.eq.s32.totalorder %s14, 1
    %p105 = por %p103, %p104
    %p107 = scmp.ne.s32.totalorder %s90, %s106
    %p108 = scmp.eq.s32.totalorder %s14, 0
    %p109 = por %p107, %p108
    %p110 = scmp.le.s32.totalorder 1, %s8
    %p111 = scmp.lt.s32.totalorder %s8, 3
    %p112 = pnand %p110, %p111
    %p113 = pneg %p112
    // Predicated region
    $region9: #{tpu_custom_call.1} parent=5 // pred_check
      _
    $region10: #{tpu_custom_call.1} parent=5 // pred_check_branch
      %115 = sbr.rel (%p112) target = $region12
    $region11: #{tpu_custom_call.1} parent=5 // pred_region
      %s116 = ssub.s32 %s8, 1
    $region12: #{tpu_custom_call.1} parent=5 // pred_fallthru
      _
    %p117 = scmp.lt.s32.totalorder %s8, 2
    // Predicated region
    $region13: #{tpu_custom_call.1} parent=5 // pred_check
      %p118 = pneg %p117
    $region14: #{tpu_custom_call.1} parent=5 // pred_check_branch
      %120 = sbr.rel (%p118) target = $region16
    $region15: #{tpu_custom_call.1} parent=5 // pred_region
      // Predicated region
      $region17: #{tpu_custom_call.1} parent=15 // pred_check
        %p121 = pneg %p42
      $region18: #{tpu_custom_call.1} parent=15 // pred_check_branch
        %123 = sbr.rel (%p121) target = $region20
      $region19: #{tpu_custom_call.1} parent=15 // pred_region
        %s124 = sadd.s32 %s15, %s16
        %p125 = scmp.lt.s32.totalorder %s124, 1
        %s126 = scalar_select %p125, %s124, 1
        %s127 = smul.addr %s126, 8
        %s128 = scalar_lea.vmem %s0, %s127
        %s129 = sadd.s32 %s15, %s16
      $region20: #{tpu_custom_call.1} parent=15 // pred_fallthru
        _
      // Predicated region
      $region21: #{tpu_custom_call.1} parent=15 // pred_check
        %p130 = pneg %p70
      $region22: #{tpu_custom_call.1} parent=15 // pred_check_branch
        %132 = sbr.rel (%p130) target = $region24
      $region23: #{tpu_custom_call.1} parent=15 // pred_region
        %s133 = sadd.s32 %s15, %s16
        %p134 = scmp.lt.s32.totalorder %s133, 1
        %s135 = scalar_select %p134, %s133, 1
        %s136 = smul.addr %s135, 8
        %s137 = scalar_lea.vmem %s1, %s136
        %s138 = sadd.s32 %s15, %s16
      $region24: #{tpu_custom_call.1} parent=15 // pred_fallthru
        _
    $region16: #{tpu_custom_call.1} parent=5 // pred_fallthru
      _
    %p139 = scmp.le.s32.totalorder 1, %s8
    %p140 = scmp.lt.s32.totalorder %s8, 3
    %p141 = pnand %p139, %p140
    %p142 = pneg %p141
    // Predicated region
    $region25: #{tpu_custom_call.1} parent=5 // pred_check
      _
    $region26: #{tpu_custom_call.1} parent=5 // pred_check_branch
      %144 = sbr.rel (%p141) target = $region28
    $region27: #{tpu_custom_call.1} parent=5 // pred_region
      %s145 = ssub.s32 %s8, 1
      %s146 = sadd.s32 %s17, %s18
      %p147 = scmp.lt.s32.totalorder %s146, 1
      %s148 = scalar_select %p147, %s146, 1
      %s149 = smul.addr %s148, 8
      %s150 = scalar_lea.vmem %s0, %s149
      %p151 = pneg %p48
      %p152 = pneg %p45
      %s153 = sadd.s32 %s17, %s18
      %p154 = scmp.lt.s32.totalorder %s153, 1
      %s155 = scalar_select %p154, %s153, 1
      %s156 = smul.addr %s155, 8
      %s157 = scalar_lea.vmem %s1, %s156
      %p158 = pneg %p76
      %p159 = pneg %p73
      %p160 = pneg %p102
      %p161 = pneg %p99
      %p162 = scmp.lt.s32.totalorder %s17, 1
      %s163 = scalar_select %p162, %s17, 1
      %s164 = scalar_lea.vmem %s2, %s163
      %s165 = sadd.s32 %s17, %s18
      %p166 = scmp.lt.s32.totalorder %s165, 1
      %s167 = scalar_select %p166, %s165, 1
      %s168 = smul.addr %s167, 8
      %s169 = scalar_lea.vmem %s0, %s168
      %s170 = sadd.s32 %s17, %s18
      %s171 = sadd.s32 %s17, %s18
      %p172 = scmp.lt.s32.totalorder %s171, 1
      %s173 = scalar_select %p172, %s171, 1
      %s174 = smul.addr %s173, 8
      %s175 = scalar_lea.vmem %s1, %s174
      %s176 = sadd.s32 %s17, %s18
      %p177 = scmp.lt.s32.totalorder %s17, 1
      %s178 = scalar_select %p177, %s17, 1
      %s179 = scalar_lea.vmem %s2, %s178
      %p180 = scmp.eq.s32.totalorder %s18, 0
      // Predicated region
      $region29: #{tpu_custom_call.1} parent=27 // pred_check
        %p181 = pneg %p180
      $region30: #{tpu_custom_call.1} parent=27 // pred_check_branch
        %183 = sbr.rel (%p181) target = $region32
      $region31: #{tpu_custom_call.1} parent=27 // pred_region
        %vm184 = vcmask 0
        %185 = vst.msk [vmem:[%s179] sm:$0x1] %vm184, 0.0
      $region32: #{tpu_custom_call.1} parent=27 // pred_fallthru
        _
      %v186 = vld [vmem:[%s169] sm:$0xff]
      %v187 = vld [vmem:[%s175] sm:$0xff]
      %vm188 = vcmask 261120
      %v189 = vsel %vm188, %v186, -inf
      %190 = vmax.xlane.f32.xlu0 %v189
      %v191 = vpop.xlane.xlu0 %190
      %v192 = vsub.f32 %v186, %v191
      %v193 = vmul.f32 %v192, 1.442695
      %v194 = vpow.pop %v193
      %v195 = vsel %vm188, %v194, 0.0
      %196 = vadd.xlane.f32.xlu0 %v195
      %v197 = vpop.xlane.xlu0 %196
      %v198 = vlog2.pop %v197
      %v199 = vmul.f32 %v198, 0.6931472
      %v200 = vadd.f32 %v199, %v191
      %v201 = vlaneseq
      %v202 = vand.u32 %v201, 127
      %203 = vset.pattern.permute.xlu0 0
      %204 = vperm.xlu0 %203, %v187
      %v205 = vpop.permute.xlu0 %204
      %vm206 = vcmp.eq.s32.totalorder %v202, %v205
      %v207 = vsel %vm206, %v186, 0.0
      %v208 = vsel %vm188, %v207, 0.0
      %209 = vadd.xlane.f32.xlu0 %v208
      %v210 = vpop.xlane.xlu0 %209
      %v211 = vsub.f32 %v200, %v210
      %s212 = sadd.s32 %s17, %s18
      %s213 = smul.u32 %s212, 8
      %v214 = vlaneseq
      %v215 = vshrl.u32 %v214, 7
      %v216 = vstv %s213
      %v217 = vadd.s32 %v215, %v216
      %vm218 = vcmp.lt.s32.totalorder %v217, 8
      %v219 = vsel %vm218, %v211, 0.0
      %v220 = vld [vmem:[%s179] sm:$0x1]
      %v221 = vrot.slane %v219, 4
      %v222 = vadd.f32 %v219, %v221
      %v223 = vrot.slane %v222, 2
      %v224 = vadd.f32 %v222, %v223
      %v225 = vrot.slane %v224, 1
      %v226 = vadd.f32 %v224, %v225
      %v227 = vadd.f32 %v220, %v226
      %vm228 = vcmask 0
      %229 = vst.msk [vmem:[%s179] sm:$0x1] %vm228, %v227
      %p230 = scmp.lt.s32.totalorder %s17, 1
      %s231 = scalar_select %p230, %s17, 1
      %s232 = scalar_lea.vmem %s2, %s231
      // Predicated region
      $region33: #{tpu_custom_call.1} parent=27 // pred_check
        %p233 = pneg %p99
      $region34: #{tpu_custom_call.1} parent=27 // pred_check_branch
        %235 = sbr.rel (%p233) target = $region36
      $region35: #{tpu_custom_call.1} parent=27 // pred_region
        _
      $region36: #{tpu_custom_call.1} parent=27 // pred_fallthru
        _
    $region28: #{tpu_custom_call.1} parent=5 // pred_fallthru
      _
    %p236 = scmp.le.s32.totalorder 2, %s8
    // Predicated region
    $region37: #{tpu_custom_call.1} parent=5 // pred_check
      %p237 = pneg %p236
    $region38: #{tpu_custom_call.1} parent=5 // pred_check_branch
      %239 = sbr.rel (%p237) target = $region40
    $region39: #{tpu_custom_call.1} parent=5 // pred_region
      %s240 = ssub.s32 %s8, 2
      // Predicated region
      $region41: #{tpu_custom_call.1} parent=39 // pred_check
        %p241 = pneg %p105
      $region42: #{tpu_custom_call.1} parent=39 // pred_check_branch
        %243 = sbr.rel (%p241) target = $region44
      $region43: #{tpu_custom_call.1} parent=39 // pred_region
        %p244 = scmp.lt.s32.totalorder %s19, 1
        %s245 = scalar_select %p244, %s19, 1
        %s246 = scalar_lea.vmem %s2, %s245
      $region44: #{tpu_custom_call.1} parent=39 // pred_fallthru
        _
    $region40: #{tpu_custom_call.1} parent=5 // pred_fallthru
      _
  $region6: #{tpu_custom_call.1} parent=0 // loop_footer
    %s12 = sadd.s32 1, %s8
  $region7: #{tpu_custom_call.1} parent=0 // loop_footer_branch
    %7 = sbr.rel target = $region3
  $region8: #{tpu_custom_call.1} parent=0 // loop_exit
    _

</llo_original>
